<compile_context>
chip_gen: v7x
topology: tpu7x:2x2x1
jax: 0.10.0
libtpu: 0.0.40
codegen_flags: <defaults>
</compile_context>

<pallas_src>
import jax
import jax.numpy as jnp
import numpy as np
from jax import lax
from jax.experimental import pallas as pl
from jax.experimental.pallas import tpu as pltpu


def _round_up(x, m):
    return ((x + m - 1) // m) * m


def _block_spec(shape, index_map, *, buffers=None):
    """BlockSpec with an optional pipeline-depth hint (graceful fallback)."""
    if buffers is None:
        return pl.BlockSpec(shape, index_map)
    try:
        return pl.BlockSpec(shape, index_map, pipeline_mode=pl.Buffered(buffers))
    except (TypeError, AttributeError):   # jax without pipeline_mode support
        return pl.BlockSpec(shape, index_map)


# ---------------------------------------------------------------------------
# Kernel: per (batch, L-tile) grid point, assemble the haloed tile in VMEM and
# run K accumulating MXU matmuls (one per tap) into an f32 accumulator.
#   x_ref : (1, C_in, TL)   native dtype (cast in-kernel)
#   xh_ref: (1, C_in, HB)   halo = first HB lanes of the next tile
#   w_ref : (K, C_out, C_in) compute dtype, resident (single-buffered)
#   b_ref : (C_out, 1) f32 [optional]
#   o_ref : (1, C_out, TL)
# ---------------------------------------------------------------------------
def _make_conv1d_kernel(k_taps, dilation, l_tile, has_bias, compute_dtype):
    def kernel(*refs):
        if has_bias:
            x_ref, xh_ref, w_ref, b_ref, o_ref = refs
        else:
            x_ref, xh_ref, w_ref, o_ref = refs
        # Haloed tile assembled in VMEM, cast to the MXU dtype in-kernel.
        x_full = jnp.concatenate(
            [x_ref[0].astype(compute_dtype), xh_ref[0].astype(compute_dtype)],
            axis=-1)                                        # (C_in, TL + HB)
        acc = None
        for k in range(k_taps):                             # static unroll over taps
            xk = x_full[:, k * dilation:k * dilation + l_tile]       # (C_in, TL)
            part = jnp.dot(w_ref[k], xk, preferred_element_type=jnp.float32)
            acc = part if acc is None else acc + part
        if has_bias:
            acc = acc + b_ref[...]
        o_ref[0] = acc.astype(o_ref.dtype)
    return kernel


def _conv1d_pallas(x_work, w_koc, bias, *, l_out, l_tile, halo_blk, dilation,
                   compute_dtype, out_dtype, in_buffers, vmem_limit_bytes):
    """x_work: (N, C_in, L_work) zero-padded, w_koc: (K, C_out, C_in)."""
    n, c_in, l_work = x_work.shape
    k_taps, c_out, c_in2 = w_koc.shape
    assert c_in == c_in2
    assert l_tile % 128 == 0 and l_tile % halo_blk == 0
    n_l_tiles = pl.cdiv(l_out, l_tile)
    assert l_work >= n_l_tiles * l_tile + halo_blk
    halo_stride = l_tile // halo_blk

    in_specs = [
        # main input tile at L-block j
        _block_spec((1, c_in, l_tile), lambda i, j: (i, 0, j), buffers=in_buffers),
        # halo: first HB lanes of tile j+1 (same array -> small re-fetch only)
        _block_spec((1, c_in, halo_blk),
                    lambda i, j: (i, 0, (j + 1) * halo_stride), buffers=in_buffers),
        # weights: constant index map + single buffer -> fetched once, resident
        _block_spec((k_taps, c_out, c_in), lambda i, j: (0, 0, 0), buffers=1),
    ]
    operands = [x_work, x_work, w_koc]
    if bias is not None:
        in_specs.append(_block_spec((c_out, 1), lambda i, j: (0, 0), buffers=1))
        operands.append(bias.reshape(c_out, 1).astype(jnp.float32))

    kernel = _make_conv1d_kernel(k_taps, dilation, l_tile, bias is not None,
                                 compute_dtype)
    return pl.pallas_call(
        kernel,
        out_shape=jax.ShapeDtypeStruct((n, c_out, l_out), out_dtype),
        grid_spec=pltpu.PrefetchScalarGridSpec(
            num_scalar_prefetch=0,
            grid=(n, n_l_tiles),
            in_specs=in_specs,
            out_specs=pl.BlockSpec((1, c_out, l_tile), lambda i, j: (i, 0, j)),
        ),
        compiler_params=pltpu.CompilerParams(
            dimension_semantics=("parallel", "parallel"),
            vmem_limit_bytes=vmem_limit_bytes),
    )(*operands)


class ConvLayer1dPallas:
    """JAX/Pallas port of ConvLayer1d forward (dense path: groups=1, stride=1)."""

    _VMEM_TILE_BUDGET = 28 << 20   # keep footprint well under v7x's 64 MiB VMEM
    _VMEM_LIMIT_CAP = 48 << 20     # explicit scoped-VMEM ceiling (all generations)

    def __init__(self, in_channels, out_channels, kernel_size=3, padding="same",
                 stride=1, dilation=1, causal=False, groups=1, separable=False,
                 bias=True, *, key, compute_dtype=jnp.bfloat16, out_dtype=None,
                 l_tile=None):
        assert stride == 1, "TODO(synk): stride > 1 not implemented"
        assert groups == 1 and not separable, \
            "TODO(synk): separable / grouped conv not implemented"
        self.in_channels = in_channels
        self.out_channels = out_channels
        self.kernel_size = kernel_size
        self.dilation = dilation
        self.causal = causal
        self.has_bias = bias
        # bf16 compute (f32 accumulation) by default; pass jnp.float32 for
        # strict-fp32 parity with a float32 PyTorch Conv1d.
        self.compute_dtype = compute_dtype
        self.out_dtype = out_dtype            # None -> match input dtype
        self.l_tile = l_tile
        # Module semantics: causal overrides user padding with dilation*(K-1).
        self.padding = dilation * (kernel_size - 1) if causal else padding

        # Deterministic PyTorch-style init: U(-1/sqrt(fan_in), 1/sqrt(fan_in))
        kw, kb = jax.random.split(key)
        fan_in = in_channels * kernel_size
        bound = 1.0 / np.sqrt(fan_in)
        self.weight = jax.random.uniform(
            kw, (out_channels, in_channels, kernel_size), jnp.float32,
            minval=-bound, maxval=bound)
        if bias:
            self.bias = jax.random.uniform(
                kb, (out_channels,), jnp.float32, minval=-bound, maxval=bound)
        else:
            self.bias = None

    # -- geometry ----------------------------------------------------------
    def _pad_geometry(self, length):
        """Returns (left_pad, right_pad, l_out) for stride-1 conv."""
        k, d = self.kernel_size, self.dilation
        halo = d * (k - 1)
        if self.causal:
            # left-only pad; output length == input length (== PyTorch's
            # pad-both-sides-then-drop-trailing for pad > 0).
            return halo, 0, length
        if isinstance(self.padding, str):
            if self.padding == "same":
                left = halo // 2
                return left, halo - left, length
            if self.padding == "valid":
                return 0, 0, length - halo
            raise ValueError(self.padding)
        p = self.padding  # int: symmetric (PyTorch semantics)
        return p, p, length + 2 * p - halo

    # -- tile / VMEM planning -----------------------------------------------
    def _plan_tiles(self, l_out, halo, x_itemsize, out_itemsize):
        cd_size = jnp.dtype(self.compute_dtype).itemsize
        halo_min = _round_up(max(halo, 1), 128)
        tl = self.l_tile if self.l_tile is not None else 1024
        tl = max(_round_up(tl, 128), halo_min)
        tl = min(tl, max(_round_up(l_out, 128), halo_min))

        def footprint(tl_, bufs):
            hb_ = 128 if halo <= 128 else tl_
            return (bufs * self.in_channels * (tl_ + hb_) * x_itemsize       # in tiles
                    + self.kernel_size * self.out_channels * self.in_channels
                    * cd_size                                                 # resident W
                    + (self.out_channels * 4 if self.has_bias else 0)         # bias
                    + 2 * self.out_channels * tl_ * out_itemsize              # out tiles
                    + self.in_channels * (tl_ + hb_) * cd_size                # x_full copy
                    + self.out_channels * tl_ * 4)                            # f32 acc

        while tl > halo_min and footprint(tl, 3) > self._VMEM_TILE_BUDGET:
            tl = max(halo_min, _round_up(tl // 2, 128))
        hb = 128 if halo <= 128 else tl
        # TODO(synk): mid-size halos (128 < halo < tl) could use a smaller
        # aligned halo block instead of a full extra tile.
        n_l_tiles = pl.cdiv(l_out, tl)
        in_bufs = 3 if n_l_tiles >= 3 else None   # 3-deep only when it can help
        vmem_limit = int(min(self._VMEM_LIMIT_CAP,
                             max(32 << 20,
                                 footprint(tl, 3) * 3 // 2 + (4 << 20))))
        return tl, hb, in_bufs, vmem_limit

    # -- forward ------------------------------------------------------------
    def __call__(self, x):
        # x: (N, C_in, L)
        n, c_in, length = x.shape
        assert c_in == self.in_channels
        k, d = self.kernel_size, self.dilation
        left, right, l_out = self._pad_geometry(length)
        assert l_out > 0, "output length must be positive"
        halo = d * (k - 1)
        out_dtype = self.out_dtype if self.out_dtype is not None else x.dtype

        tl, hb, in_bufs, vmem_limit = self._plan_tiles(
            l_out, halo, jnp.dtype(x.dtype).itemsize, jnp.dtype(out_dtype).itemsize)

        n_l_tiles = pl.cdiv(l_out, tl)
        l_work = n_l_tiles * tl + hb
        pad_right = l_work - left - length
        assert pad_right >= 0
        # Single zero-pad pass (conv left-pad + right alignment for lane-dense
        # tiling / halo fetch).  This is the only wrapper-side HBM pass; the
        # K-tap shifted stack and the dtype cast from the previous version are
        # gone -- taps are assembled and cast in VMEM inside the kernel.
        # TODO(synk): removing this pad too needs in-kernel boundary masking.
        x_work = jnp.pad(x, ((0, 0), (0, 0), (left, pad_right)))

        # Weight layout (K, C_out, C_in): per-tap (C_out, C_in) slab for the
        # MXU; cast once here (tiny, resident in VMEM for the whole grid).
        w_koc = jnp.transpose(self.weight, (2, 0, 1)).astype(self.compute_dtype)

        return _conv1d_pallas(
            x_work, w_koc, self.bias, l_out=l_out, l_tile=tl, halo_blk=hb,
            dilation=d, compute_dtype=self.compute_dtype, out_dtype=out_dtype,
            in_buffers=in_bufs, vmem_limit_bytes=vmem_limit)


# ---------------------------------------------------------------------------
# Pure-JAX reference (lax.conv_general_dilated) for validation.  Uses the same
# compute-dtype operands + f32 accumulation so tolerances can stay tight.
# ---------------------------------------------------------------------------
def _reference_conv1d(layer, x):
    left, right, _ = layer._pad_geometry(x.shape[-1])
    out = lax.conv_general_dilated(
        x.astype(layer.compute_dtype),
        layer.weight.astype(layer.compute_dtype),
        window_strides=(1,),
        padding=[(left, right)],
        rhs_dilation=(layer.dilation,),
        dimension_numbers=("NCH", "OIH", "NCH"),
        preferred_element_type=jnp.float32,
    )
    if layer.has_bias:
        out = out + layer.bias.reshape(1, -1, 1)
    return out.astype(x.dtype)


if __name__ == "__main__":
    key = jax.random.PRNGKey(0)
    k_x, k_l1, k_l2, k_l3 = jax.random.split(key, 4)

    N, C_IN, C_OUT, L = 2, 4, 8, 16
    x = jax.random.normal(k_x, (N, C_IN, L), jnp.float32)

    # 1) default config: kernel_size=3, padding='same', stride=1, dilation=1
    layer = ConvLayer1dPallas(C_IN, C_OUT, kernel_size=3, padding="same",
                              dilation=1, causal=False, bias=True, key=k_l1)
    out = jax.block_until_ready(layer(x))
    ref = _reference_conv1d(layer, x)
    np.testing.assert_allclose(np.asarray(out), np.asarray(ref),
                               rtol=1e-4, atol=1e-4)
    assert out.shape == (N, C_OUT, L)

    # 2) causal config: left pad = dilation*(K-1), output length == L
    layer_c = ConvLayer1dPallas(C_IN, C_OUT, kernel_size=3, padding="same",
                                dilation=2, causal=True, bias=True, key=k_l2)
    out_c = jax.block_until_ready(layer_c(x))
    ref_c = _reference_conv1d(layer_c, x)
    np.testing.assert_allclose(np.asarray(out_c), np.asarray(ref_c),
                               rtol=1e-4, atol=1e-4)
    assert out_c.shape == (N, C_OUT, L)

    # 3) int padding, no bias
    layer_p = ConvLayer1dPallas(C_IN, C_OUT, kernel_size=5, padding=2,
                                dilation=1, causal=False, bias=False, key=k_l3)
    out_p = jax.block_until_ready(layer_p(x))
    ref_p = _reference_conv1d(layer_p, x)
    np.testing.assert_allclose(np.asarray(out_p), np.asarray(ref_p),
                               rtol=1e-4, atol=1e-4)
    assert out_p.shape == (N, C_OUT, L)

    print("KERNEL_OK")
</pallas_src>

<mosaic_0001>
module attributes {stable_mosaic.version = 11 : i64} {
  func.func @kernel(%arg0: i32, %arg1: i32, %arg2: memref<1x4x128xf32, #tpu.memory_space<vmem>>, %arg3: memref<1x4x128xf32, #tpu.memory_space<vmem>>, %arg4: memref<3x8x4xbf16, #tpu.memory_space<vmem>>, %arg5: memref<8x1xf32, #tpu.memory_space<vmem>>, %arg6: memref<1x8x128xf32, #tpu.memory_space<vmem>>) attributes {dimension_semantics = [#tpu.dimension_semantics<parallel>, #tpu.dimension_semantics<parallel>], iteration_bounds = array<i64: 2, 1>, scalar_prefetch = 0 : i64, scratch_operands = 0 : i64, tpu.core_type = #tpu.core_type<tc>, window_params = [{transform_indices = @transform_0, window_bounds = array<i64: 1, 4, 128>}, {transform_indices = @transform_1, window_bounds = array<i64: 1, 4, 128>}, {pipeline_mode = #tpu.pipeline_mode<synchronous>, transform_indices = @transform_2, window_bounds = array<i64: 3, 8, 4>}, {pipeline_mode = #tpu.pipeline_mode<synchronous>, transform_indices = @transform_3, window_bounds = array<i64: 8, 1>}, {transform_indices = @transform_4, window_bounds = array<i64: 1, 8, 128>}]} {
    %c0 = arith.constant 0 : index
    %c0_0 = arith.constant 0 : index
    %c0_1 = arith.constant 0 : index
    %0 = vector.load %arg2[%c0, %c0_0, %c0_1] : memref<1x4x128xf32, #tpu.memory_space<vmem>>, vector<1x4x128xf32>
    %1 = vector.shape_cast %0 : vector<1x4x128xf32> to vector<4x128xf32>
    %2 = arith.truncf %1 : vector<4x128xf32> to vector<4x128xbf16>
    %c0_2 = arith.constant 0 : index
    %c0_3 = arith.constant 0 : index
    %c0_4 = arith.constant 0 : index
    %3 = vector.load %arg3[%c0_2, %c0_3, %c0_4] : memref<1x4x128xf32, #tpu.memory_space<vmem>>, vector<1x4x128xf32>
    %4 = vector.shape_cast %3 : vector<1x4x128xf32> to vector<4x128xf32>
    %5 = arith.truncf %4 : vector<4x128xf32> to vector<4x128xbf16>
    %6 = tpu.concatenate %2, %5 in 1 : vector<4x128xbf16>, vector<4x128xbf16> -> vector<4x256xbf16>
    %7 = vector.extract_strided_slice %6 {offsets = [0, 0], sizes = [4, 128], strides = [1, 1]} : vector<4x256xbf16> to vector<4x128xbf16>
    %c0_5 = arith.constant 0 : index
    %c0_6 = arith.constant 0 : index
    %c0_7 = arith.constant 0 : index
    %8 = vector.load %arg4[%c0_5, %c0_6, %c0_7] : memref<3x8x4xbf16, #tpu.memory_space<vmem>>, vector<1x8x4xbf16>
    %9 = vector.shape_cast %8 : vector<1x8x4xbf16> to vector<8x4xbf16>
    %cst = arith.constant dense<0.000000e+00> : vector<8x128xf32>
    %10 = tpu.matmul %9, %7, %cst {dimension_numbers = #tpu.dot_dimension_numbers<[1], [0], [0], [1], [0, 0, 1, 1], [], []>} : vector<8x4xbf16>, vector<4x128xbf16>, vector<8x128xf32> -> vector<8x128xf32>
    %11 = vector.extract_strided_slice %6 {offsets = [0, 1], sizes = [4, 128], strides = [1, 1]} : vector<4x256xbf16> to vector<4x128xbf16>
    %c1 = arith.constant 1 : index
    %c0_8 = arith.constant 0 : index
    %c0_9 = arith.constant 0 : index
    %12 = vector.load %arg4[%c1, %c0_8, %c0_9] : memref<3x8x4xbf16, #tpu.memory_space<vmem>>, vector<1x8x4xbf16>
    %13 = vector.shape_cast %12 : vector<1x8x4xbf16> to vector<8x4xbf16>
    %cst_10 = arith.constant dense<0.000000e+00> : vector<8x128xf32>
    %14 = tpu.matmul %13, %11, %cst_10 {dimension_numbers = #tpu.dot_dimension_numbers<[1], [0], [0], [1], [0, 0, 1, 1], [], []>} : vector<8x4xbf16>, vector<4x128xbf16>, vector<8x128xf32> -> vector<8x128xf32>
    %15 = arith.addf %10, %14 : vector<8x128xf32>
    %16 = vector.extract_strided_slice %6 {offsets = [0, 2], sizes = [4, 128], strides = [1, 1]} : vector<4x256xbf16> to vector<4x128xbf16>
    %c2 = arith.constant 2 : index
    %c0_11 = arith.constant 0 : index
    %c0_12 = arith.constant 0 : index
    %17 = vector.load %arg4[%c2, %c0_11, %c0_12] : memref<3x8x4xbf16, #tpu.memory_space<vmem>>, vector<1x8x4xbf16>
    %18 = vector.shape_cast %17 : vector<1x8x4xbf16> to vector<8x4xbf16>
    %cst_13 = arith.constant dense<0.000000e+00> : vector<8x128xf32>
    %19 = tpu.matmul %18, %16, %cst_13 {dimension_numbers = #tpu.dot_dimension_numbers<[1], [0], [0], [1], [0, 0, 1, 1], [], []>} : vector<8x4xbf16>, vector<4x128xbf16>, vector<8x128xf32> -> vector<8x128xf32>
    %20 = arith.addf %15, %19 : vector<8x128xf32>
    %c0_14 = arith.constant 0 : index
    %c0_15 = arith.constant 0 : index
    %21 = vector.load %arg5[%c0_14, %c0_15] : memref<8x1xf32, #tpu.memory_space<vmem>>, vector<8x1xf32>
    %22 = vector.broadcast %21 : vector<8x1xf32> to vector<8x128xf32>
    %23 = arith.addf %20, %22 : vector<8x128xf32>
    %c0_16 = arith.constant 0 : index
    %c0_17 = arith.constant 0 : index
    %c0_18 = arith.constant 0 : index
    %24 = vector.load %arg6[%c0_16, %c0_17, %c0_18] : memref<1x8x128xf32, #tpu.memory_space<vmem>>, vector<1x8x128xf32>
    %25 = vector.shape_cast %24 : vector<1x8x128xf32> to vector<8x128xf32>
    %26 = vector.shape_cast %23 : vector<8x128xf32> to vector<1x8x128xf32>
    tpu.vector_store %arg6[%c0_16, %c0_17, %c0_18], %26 {strides = array<i32>} : memref<1x8x128xf32, #tpu.memory_space<vmem>>, vector<1x8x128xf32>,
    return
  }
  func.func @transform_0(%arg0: i32, %arg1: i32) -> (i32, i32, i32) {
    %c0_i32 = arith.constant 0 : i32
    %c0_i32_0 = arith.constant 0 : i32
    return %arg0, %c0_i32, %arg1 : i32, i32, i32
  }
  func.func @transform_1(%arg0: i32, %arg1: i32) -> (i32, i32, i32) {
    %c1_i32 = arith.constant 1 : i32
    %0 = arith.addi %arg1, %c1_i32 : i32
    %c1_i32_0 = arith.constant 1 : i32
    %1 = arith.muli %0, %c1_i32_0 : i32
    %c0_i32 = arith.constant 0 : i32
    %c0_i32_1 = arith.constant 0 : i32
    return %arg0, %c0_i32, %1 : i32, i32, i32
  }
  func.func @transform_2(%arg0: i32, %arg1: i32) -> (i32, i32, i32) {
    %c0_i32 = arith.constant 0 : i32
    %c0_i32_0 = arith.constant 0 : i32
    %c0_i32_1 = arith.constant 0 : i32
    %c0_i32_2 = arith.constant 0 : i32
    return %c0_i32, %c0_i32_0, %c0_i32_1 : i32, i32, i32
  }
  func.func @transform_3(%arg0: i32, %arg1: i32) -> (i32, i32) {
    %c0_i32 = arith.constant 0 : i32
    %c0_i32_0 = arith.constant 0 : i32
    %c0_i32_1 = arith.constant 0 : i32
    return %c0_i32, %c0_i32_0 : i32, i32
  }
  func.func @transform_4(%arg0: i32, %arg1: i32) -> (i32, i32, i32) {
    %c0_i32 = arith.constant 0 : i32
    %c0_i32_0 = arith.constant 0 : i32
    return %arg0, %c0_i32, %arg1 : i32, i32, i32
  }
}

</mosaic_0001>

<llo_original>
// kernel: tpu_custom_call.1
$region0: #{tpu_custom_call.1}
  #allocation0 [shape = 'u32[]', space=smem, size = 0x4, offset = 0x4, fixed_abs, tag = 'smem constant byte address 0x4 - core index']
  #allocation1 [shape = 'u32[144,128]{1,0:T(1,128)}', space=vmem, size = 0x12000, scoped, tag = 'internal scratch']
  %s0 = inlined_call_operand.vmem [shape: f32[2,4,256], index: 0, kind: input, shape index: {}]
  %s1 = inlined_call_operand.hbm [shape: f32[2,4,256], index: 1, kind: input, shape index: {}]
  %s2 = inlined_call_operand.vmem [shape: bf16[3,8,4], index: 2, kind: input, shape index: {}]
  %s3 = inlined_call_operand.vmem [shape: f32[8,1], index: 3, kind: input, shape index: {}]
  %s4 = inlined_call_operand.hbm [shape: f32[2,8,16], index: 4, kind: output, shape index: {}]
  %s5 = sld [smem:[#allocation0]]
  $region53: #{tpu_custom_call.1} parent=0
    _
  %s7 = ssub.s32 1, %s5
  %s8 = scalar_select 0, %s7, %s5
  $region1: #{tpu_custom_call.1} parent=0
    #allocation2 [shape = 'u8[4096]{0}', space=vmem, size = 0x1000, scoped, tag = 'input window, operand 1']
    #allocation3 [shape = 's32[2]{0}', space=sflag, size = 0x8, scoped, tag = 'scoped memory for tpu_custom_call.1']
    #allocation4 [shape = 's32[2]{0}', space=sflag, size = 0x8, scoped, tag = 'scoped memory for tpu_custom_call.1']
    #allocation5 [shape = 'u8[8192]{0}', space=vmem, size = 0x2000, scoped, tag = 'output window, operand 0']
    %9 = vsyncpa [#allocation3], 0
    %s10 = scalar_lea.sflag [#allocation3], 1
    %11 = vsyncpa %s10, 0
    %12 = vsyncpa [#allocation4], 0
    %s13 = scalar_lea.sflag [#allocation4], 1
    %14 = vsyncpa %s13, 0
    loop: start=0, step=1, limit=4
    $region2: #{tpu_custom_call.1} parent=1 // loop_pre_header
      _
    $region3: #{tpu_custom_call.1} parent=1 // loop_header
      %s16 = sphi 0, %s20
      %p17 = scmp.ge.s32.totalorder %s16, 4
      %s23 = sphi 0, %s35
      %s24 = sphi 0, %s31
      %s25 = sphi 0, %s23
      %s26 = sphi 0, %s24
      %s27 = sphi 0, %s25
      %s28 = sphi 0, %s26
      %s40 = sphi 0, %s42
      %s43 = sphi 0, %s40
      %s44 = sphi 0, %s43
      %s60 = sphi 0, %s44
      %s70 = sphi 0, %s72
      %s73 = sphi 0, %s70
      %s74 = sphi 0, %s73
      %s90 = sphi 0, %s74
      %s94 = sphi 0, %s94
      %s96 = sphi 0, %s94
      %s97 = sphi 0, %s96
      %s111 = sphi 0, %s97
      %s115 = sphi 0, %s115
      %s117 = sphi 0, %s115
      %s118 = sphi 0, %s117
      %s132 = sphi 0, %s118
      %s140 = sphi 0, %s142
      %s143 = sphi 0, %s140
      %s144 = sphi 0, %s143
      %s160 = sphi 0, %s144
    $region4: #{tpu_custom_call.1} parent=1 // loop_header_branch
      %19 = sbr.rel (%p17) target = $region8
    $region5: #{tpu_custom_call.1} parent=1 // loop_body
      %s21 = ssub.s32 %s16, 1
      %s22 = ssub.s32 %s16, 2
      %s29 = sadd.s32 1, %s24
      %p30 = scmp.ge.s32.totalorder %s29, 1
      %s31 = scalar_select %p30, 0, %s29
      %s32 = sadd.s32 1, %s23
      %s33 = scalar_select %p30, %s32, %s23
      %p34 = scmp.ge.s32.totalorder %s33, 2
      %s35 = scalar_select %p34, 0, %s33
      %s36 = ssub.s32 %s23, %s35
      %s37 = ssub.s32 %s24, %s31
      %s38 = sor.u32 %s36, %s37
      %p39 = scmp.eq.s32.totalorder %s38, 0
      %s41 = sadd.s32 %s40, 1
      %s42 = scalar_select %p39, %s40, %s41
      %p45 = pneg %p39
      %p46 = scmp.eq.s32.totalorder %s16, 1
      %p47 = por %p45, %p46
      %p48 = scmp.ne.s32.totalorder %s40, %s43
      %p49 = scmp.eq.s32.totalorder %s16, 0
      %p50 = por %p48, %p49
      %p51 = scmp.ne.s32.totalorder %s40, %s43
      %p52 = scmp.eq.s32.totalorder %s21, 1
      %p53 = por %p51, %p52
      %p54 = scmp.ne.s32.totalorder %s43, %s44
      %p55 = scmp.eq.s32.totalorder %s21, 0
      %p56 = por %p54, %p55
      %p57 = scmp.ne.s32.totalorder %s43, %s44
      %p58 = scmp.eq.s32.totalorder %s22, 1
      %p59 = por %p57, %p58
      %p61 = scmp.ne.s32.totalorder %s44, %s60
      %p62 = scmp.eq.s32.totalorder %s22, 0
      %p63 = por %p61, %p62
      %s64 = sadd.s32 %s24, 1
      %s65 = sadd.s32 %s31, 1
      %s66 = ssub.s32 %s23, %s35
      %s67 = ssub.s32 %s64, %s65
      %s68 = sor.u32 %s66, %s67
      %p69 = scmp.eq.s32.totalorder %s68, 0
      %s71 = sadd.s32 %s70, 1
      %s72 = scalar_select %p69, %s70, %s71
      %p75 = pneg %p69
      %p76 = scmp.eq.s32.totalorder %s16, 1
      %p77 = por %p75, %p76
      %p78 = scmp.ne.s32.totalorder %s70, %s73
      %p79 = scmp.eq.s32.totalorder %s16, 0
      %p80 = por %p78, %p79
      %p81 = scmp.ne.s32.totalorder %s70, %s73
      %p82 = scmp.eq.s32.totalorder %s21, 1
      %p83 = por %p81, %p82
      %p84 = scmp.ne.s32.totalorder %s73, %s74
      %p85 = scmp.eq.s32.totalorder %s21, 0
      %p86 = por %p84, %p85
      %p87 = scmp.ne.s32.totalorder %s73, %s74
      %p88 = scmp.eq.s32.totalorder %s22, 1
      %p89 = por %p87, %p88
      %p91 = scmp.ne.s32.totalorder %s74, %s90
      %p92 = scmp.eq.s32.totalorder %s22, 0
      %p93 = por %p91, %p92
      %s95 = sadd.s32 %s94, 1
      %p98 = scmp.eq.s32.totalorder %s16, 1
      %p99 = scmp.ne.s32.totalorder %s94, %s96
      %p100 = scmp.eq.s32.totalorder %s16, 0
      %p101 = por %p99, %p100
      %p102 = scmp.ne.s32.totalorder %s94, %s96
      %p103 = scmp.eq.s32.totalorder %s21, 1
      %p104 = por %p102, %p103
      %p105 = scmp.ne.s32.totalorder %s96, %s97
      %p106 = scmp.eq.s32.totalorder %s21, 0
      %p107 = por %p105, %p106
      %p108 = scmp.ne.s32.totalorder %s96, %s97
      %p109 = scmp.eq.s32.totalorder %s22, 1
      %p110 = por %p108, %p109
      %p112 = scmp.ne.s32.totalorder %s97, %s111
      %p113 = scmp.eq.s32.totalorder %s22, 0
      %p114 = por %p112, %p113
      %s116 = sadd.s32 %s115, 1
      %p119 = scmp.eq.s32.totalorder %s16, 1
      %p120 = scmp.ne.s32.totalorder %s115, %s117
      %p121 = scmp.eq.s32.totalorder %s16, 0
      %p122 = por %p120, %p121
      %p123 = scmp.ne.s32.totalorder %s115, %s117
      %p124 = scmp.eq.s32.totalorder %s21, 1
      %p125 = por %p123, %p124
      %p126 = scmp.ne.s32.totalorder %s117, %s118
      %p127 = scmp.eq.s32.totalorder %s21, 0
      %p128 = por %p126, %p127
      %p129 = scmp.ne.s32.totalorder %s117, %s118
      %p130 = scmp.eq.s32.totalorder %s22, 1
      %p131 = por %p129, %p130
      %p133 = scmp.ne.s32.totalorder %s118, %s132
      %p134 = scmp.eq.s32.totalorder %s22, 0
      %p135 = por %p133, %p134
      %s136 = ssub.s32 %s23, %s35
      %s137 = ssub.s32 %s24, %s31
      %s138 = sor.u32 %s136, %s137
      %p139 = scmp.eq.s32.totalorder %s138, 0
      %s141 = sadd.s32 %s140, 1
      %s142 = scalar_select %p139, %s140, %s141
      %p145 = pneg %p139
      %p146 = scmp.eq.s32.totalorder %s16, 1
      %p147 = por %p145, %p146
      %p148 = scmp.ne.s32.totalorder %s140, %s143
      %p149 = scmp.eq.s32.totalorder %s16, 0
      %p150 = por %p148, %p149
      %p151 = scmp.ne.s32.totalorder %s140, %s143
      %p152 = scmp.eq.s32.totalorder %s21, 1
      %p153 = por %p151, %p152
      %p154 = scmp.ne.s32.totalorder %s143, %s144
      %p155 = scmp.eq.s32.totalorder %s21, 0
      %p156 = por %p154, %p155
      %p157 = scmp.ne.s32.totalorder %s143, %s144
      %p158 = scmp.eq.s32.totalorder %s22, 1
      %p159 = por %p157, %p158
      %p161 = scmp.ne.s32.totalorder %s144, %s160
      %p162 = scmp.eq.s32.totalorder %s22, 0
      %p163 = por %p161, %p162
      %p164 = scmp.le.s32.totalorder 1, %s16
      %p165 = scmp.lt.s32.totalorder %s16, 3
      %p166 = pnand %p164, %p165
      %p167 = pneg %p166
      // Predicated region
      $region9: #{tpu_custom_call.1} parent=5 // pred_check
        _
      $region10: #{tpu_custom_call.1} parent=5 // pred_check_branch
        %169 = sbr.rel (%p166) target = $region12
      $region11: #{tpu_custom_call.1} parent=5 // pred_region
        %s170 = ssub.s32 %s16, 1
        // Predicated region
        $region13: #{tpu_custom_call.1} parent=11 // pred_check
          %p171 = pneg %p107
        $region14: #{tpu_custom_call.1} parent=11 // pred_check_branch
          %173 = sbr.rel (%p171) target = $region16
        $region15: #{tpu_custom_call.1} parent=11 // pred_region
          _
        $region16: #{tpu_custom_call.1} parent=11 // pred_fallthru
          _
        // Predicated region
        $region17: #{tpu_custom_call.1} parent=11 // pred_check
          %p174 = pneg %p128
        $region18: #{tpu_custom_call.1} parent=11 // pred_check_branch
          %176 = sbr.rel (%p174) target = $region20
        $region19: #{tpu_custom_call.1} parent=11 // pred_region
          _
        $region20: #{tpu_custom_call.1} parent=11 // pred_fallthru
          _
      $region12: #{tpu_custom_call.1} parent=5 // pred_fallthru
        _
      %p177 = scmp.lt.s32.totalorder %s16, 2
      // Predicated region
      $region21: #{tpu_custom_call.1} parent=5 // pred_check
        %p178 = pneg %p177
      $region22: #{tpu_custom_call.1} parent=5 // pred_check_branch
        %180 = sbr.rel (%p178) target = $region24
      $region23: #{tpu_custom_call.1} parent=5 // pred_region
        // Predicated region
        $region25: #{tpu_custom_call.1} parent=23 // pred_check
          %p181 = pneg %p50
        $region26: #{tpu_custom_call.1} parent=23 // pred_check_branch
          %183 = sbr.rel (%p181) target = $region28
        $region27: #{tpu_custom_call.1} parent=23 // pred_region
          %p184 = scmp.lt.s32.totalorder %s23, 1
          %s185 = scalar_select %p184, %s23, 1
          %p186 = scmp.lt.s32.totalorder %s24, 1
          %s187 = scalar_select %p186, %s24, 1
          %s188 = smul.addr %s185, 2
          %s189 = sadd.s32 %s187, %s188
          %s190 = smul.addr %s189, 4
          %s191 = scalar_lea.vmem %s0, %s190
        $region28: #{tpu_custom_call.1} parent=23 // pred_fallthru
          _
        // Predicated region
        $region29: #{tpu_custom_call.1} parent=23 // pred_check
          %p192 = pneg %p80
        $region30: #{tpu_custom_call.1} parent=23 // pred_check_branch
          %194 = sbr.rel (%p192) target = $region32
        $region31: #{tpu_custom_call.1} parent=23 // pred_region
          %s195 = sand.u32 %s70, 1
          %s196 = scalar_lea.sflag [#allocation3], %s195
          %s197 = sand.u32 %s70, 1
          %s198 = smul.addr %s197, 4
          %s199 = scalar_lea.vmem [#allocation2], %s198
          %s200 = sadd.s32 %s24, 1
          %s202 = ssub.s32 64, 64
          %203 = vsyncadd %s196, %s202
          %s204 = smul.addr %s23, 2
          %s205 = sadd.s32 %s200, %s204
          %s206 = smul.addr %s205, 64
          %s207 = scalar_lea.hbm %s1, %s206
          %s209 = sshll.u32 %s199, 4
          %s210 = int_to_ptr.vmem [resolvable:$true] %s209
          %212 = dma.hbm_to_vmem [thread:$0]  %s207, 64, %s210, %s196
        $region32: #{tpu_custom_call.1} parent=23 // pred_fallthru
          _
      $region24: #{tpu_custom_call.1} parent=5 // pred_fallthru
        _
      %p213 = scmp.le.s32.totalorder 1, %s16
      %p214 = scmp.lt.s32.totalorder %s16, 3
      %p215 = pnand %p213, %p214
      %p216 = pneg %p215
      // Predicated region
      $region33: #{tpu_custom_call.1} parent=5 // pred_check
        _
      $region34: #{tpu_custom_call.1} parent=5 // pred_check_branch
        %218 = sbr.rel (%p215) target = $region36
      $region35: #{tpu_custom_call.1} parent=5 // pred_region
        %s219 = ssub.s32 %s16, 1
        %s220 = sand.u32 %s73, 1
        %s221 = scalar_lea.sflag [#allocation3], %s220
        %s222 = sand.u32 %s73, 1
        %s223 = smul.addr %s222, 4
        %s224 = scalar_lea.vmem [#allocation2], %s223
        // Predicated region
        $region37: #{tpu_custom_call.1} parent=35 // pred_check
          %p225 = pneg %p86
        $region38: #{tpu_custom_call.1} parent=35 // pred_check_branch
          %227 = sbr.rel (%p225) target = $region40
        $region39: #{tpu_custom_call.1} parent=35 // pred_region
          %228 = dma.done %s221, 64
        $region40: #{tpu_custom_call.1} parent=35 // pred_fallthru
          _
        %p229 = scmp.lt.s32.totalorder %s25, 1
        %s230 = scalar_select %p229, %s25, 1
        %p231 = scmp.lt.s32.totalorder %s26, 1
        %s232 = scalar_select %p231, %s26, 1
        %s233 = smul.addr %s230, 2
        %s234 = sadd.s32 %s232, %s233
        %s235 = smul.addr %s234, 4
        %s236 = scalar_lea.vmem %s0, %s235
        %p237 = pneg %p56
        %p238 = pneg %p53
        %s239 = sand.u32 %s73, 1
        %s240 = scalar_lea.sflag [#allocation3], %s239
        %s241 = sand.u32 %s73, 1
        %s242 = smul.addr %s241, 4
        %s243 = scalar_lea.vmem [#allocation2], %s242
        %p244 = pneg %p86
        %p245 = pneg %p83
        %p246 = pneg %p107
        %p247 = pneg %p104
        %p248 = pneg %p128
        %p249 = pneg %p125
        %p250 = pneg %p156
        %p251 = pneg %p153
        %s252 = sand.u32 %s143, 1
        %s253 = scalar_lea.sflag [#allocation4], %s252
        %s254 = sand.u32 %s143, 1
        %s255 = smul.addr %s254, 8
        %s256 = scalar_lea.vmem [#allocation5], %s255
        %p257 = scmp.lt.s32.totalorder %s25, 1
        %s258 = scalar_select %p257, %s25, 1
        %p259 = scmp.lt.s32.totalorder %s26, 1
        %s260 = scalar_select %p259, %s26, 1
        %s261 = smul.addr %s258, 2
        %s262 = sadd.s32 %s260, %s261
        %s263 = smul.addr %s262, 4
        %s264 = scalar_lea.vmem %s0, %s263
        %s265 = sadd.s32 %s26, 1
        %v267 = vld [vmem:[%s264] sm:$0xf]
        %v268 = vpack.c.bf16 %v267, %v267
        %v269 = vld [vmem:[%s224] sm:$0xf]
        %v270 = vpack.c.bf16 %v269, %v269
        %v271 = vld [vmem:[%s2] sm:$0xf]
        %s272 = scalar_lea.vmem %s2, 4
        %v273 = vld [vmem:[%s272] sm:$0xf]
        %276 = vrot.lane.b32.xlu0 %v268, 127
        %v277 = vpop.permute.xlu0 %276
        %278 = vrot.lane.b32.xlu0 %v270, 127
        %v279 = vpop.permute.xlu0 %278
        %vm280 = vcmask 1039360
        %v281 = vsel %vm280, %v277, %v279
        %vm282 = vcmask 31744
        %v284 = vsel %vm282, %v273, 0
        %vm286 = vcmask 1041408
        %v288 = vsel %vm286, %v281, 0
        %290 = vmatprep.subr.bf16.mxu0 0
        %291 = vmatpush1.bf16.msra.mxu0 %v288
        %292 = vmatprep.subr.bf16.mxu0 0
        %293 = vmatpush1.bf16.msra.mxu0 0
        %294 = vmatprep.subr.bf16.mxu0 0
        %295 = vmatpush1.bf16.msra.mxu0 0
        %296 = vmatprep.subr.bf16.mxu0 0
        %297 = vmatpush1.bf16.msra.mxu0 0
        %298 = vmatprep.subr.bf16.mxu0 0
        %299 = vmatpush1.bf16.msra.mxu0 0
        %300 = vmatprep.subr.bf16.mxu0 0
        %301 = vmatpush1.bf16.msra.mxu0 0
        %302 = vmatprep.subr.bf16.mxu0 0
        %303 = vmatpush1.bf16.msra.mxu0 0
        %304 = vmatprep.subr.bf16.mxu0 0
        %305 = vmatpush1.bf16.msra.mxu0 0
        %306 = vmatprep.subr.bf16.mxu0 0
        %307 = vmatpush1.bf16.msra.mxu0 0
        %308 = vmatprep.subr.bf16.mxu0 0
        %309 = vmatpush1.bf16.msra.mxu0 0
        %310 = vmatprep.subr.bf16.mxu0 0
        %311 = vmatpush1.bf16.msra.mxu0 0
        %312 = vmatprep.subr.bf16.mxu0 0
        %313 = vmatpush1.bf16.msra.mxu0 0
        %314 = vmatprep.subr.bf16.mxu0 0
        %315 = vmatpush1.bf16.msra.mxu0 0
        %316 = vmatprep.subr.bf16.mxu0 0
        %317 = vmatpush1.bf16.msra.mxu0 0
        %318 = vmatprep.subr.bf16.mxu0 0
        %319 = vmatpush1.bf16.msra.mxu0 0
        %320 = vmatprep.subr.bf16.mxu0 0
        %321 = vmatpush1.bf16.msra.mxu0 0
        %322 = vmatprep.mubr.bf16.mxu0 0
        %323 = vmatmul.mubr.bf16.gmra.mrb[0].mxu0 %v284
        %v324 = vpop.f32.mrb[0].mxu0
        %v325 = vadd.f32 0.0, %v324
        %v326 = vpop.f32.mrb[0].mxu0
        %v327 = vpop.f32.mrb[0].mxu0
        %v328 = vpop.f32.mrb[0].mxu0
        %329 = vdwg.mxu0
        %v331 = vsel %vm282, %v271, 0
        %v334 = vsel %vm286, %v268, 0
        %336 = vmatprep.subr.bf16.mxu0 0
        %337 = vmatpush1.bf16.msra.mxu0 %v334
        %338 = vmatprep.subr.bf16.mxu0 0
        %339 = vmatpush1.bf16.msra.mxu0 0
        %340 = vmatprep.subr.bf16.mxu0 0
        %341 = vmatpush1.bf16.msra.mxu0 0
        %342 = vmatprep.subr.bf16.mxu0 0
        %343 = vmatpush1.bf16.msra.mxu0 0
        %344 = vmatprep.subr.bf16.mxu0 0
        %345 = vmatpush1.bf16.msra.mxu0 0
        %346 = vmatprep.subr.bf16.mxu0 0
        %347 = vmatpush1.bf16.msra.mxu0 0
        %348 = vmatprep.subr.bf16.mxu0 0
        %349 = vmatpush1.bf16.msra.mxu0 0
        %350 = vmatprep.subr.bf16.mxu0 0
        %351 = vmatpush1.bf16.msra.mxu0 0
        %352 = vmatprep.subr.bf16.mxu0 0
        %353 = vmatpush1.bf16.msra.mxu0 0
        %354 = vmatprep.subr.bf16.mxu0 0
        %355 = vmatpush1.bf16.msra.mxu0 0
        %356 = vmatprep.subr.bf16.mxu0 0
        %357 = vmatpush1.bf16.msra.mxu0 0
        %358 = vmatprep.subr.bf16.mxu0 0
        %359 = vmatpush1.bf16.msra.mxu0 0
        %360 = vmatprep.subr.bf16.mxu0 0
        %361 = vmatpush1.bf16.msra.mxu0 0
        %362 = vmatprep.subr.bf16.mxu0 0
        %363 = vmatpush1.bf16.msra.mxu0 0
        %364 = vmatprep.subr.bf16.mxu0 0
        %365 = vmatpush1.bf16.msra.mxu0 0
        %366 = vmatprep.subr.bf16.mxu0 0
        %367 = vmatpush1.bf16.msra.mxu0 0
        %368 = vmatprep.mubr.bf16.mxu0 0
        %369 = vmatmul.mubr.bf16.gmra.mrb[0].mxu0 %v331
        %v370 = vpop.f32.mrb[0].mxu0
        %v371 = vadd.f32 %v325, %v370
        %v372 = vpop.f32.mrb[0].mxu0
        %v373 = vpop.f32.mrb[0].mxu0
        %v374 = vpop.f32.mrb[0].mxu0
        %375 = vdwg.mxu0
        %s376 = scalar_lea.vmem %s2, 8
        %v377 = vld [vmem:[%s376] sm:$0xf]
        %378 = vrot.lane.b32.xlu0 %v268, 126
        %v379 = vpop.permute.xlu0 %378
        %380 = vrot.lane.b32.xlu0 %v270, 126
        %v381 = vpop.permute.xlu0 %380
        %vm382 = vcmask 1031168
        %v383 = vsel %vm382, %v379, %v381
        %v385 = vsel %vm282, %v377, 0
        %v388 = vsel %vm286, %v383, 0
        %390 = vmatprep.subr.bf16.mxu0 0
        %391 = vmatpush1.bf16.msra.mxu0 %v388
        %392 = vmatprep.subr.bf16.mxu0 0
        %393 = vmatpush1.bf16.msra.mxu0 0
        %394 = vmatprep.subr.bf16.mxu0 0
        %395 = vmatpush1.bf16.msra.mxu0 0
        %396 = vmatprep.subr.bf16.mxu0 0
        %397 = vmatpush1.bf16.msra.mxu0 0
        %398 = vmatprep.subr.bf16.mxu0 0
        %399 = vmatpush1.bf16.msra.mxu0 0
        %400 = vmatprep.subr.bf16.mxu0 0
        %401 = vmatpush1.bf16.msra.mxu0 0
        %402 = vmatprep.subr.bf16.mxu0 0
        %403 = vmatpush1.bf16.msra.mxu0 0
        %404 = vmatprep.subr.bf16.mxu0 0
        %405 = vmatpush1.bf16.msra.mxu0 0
        %406 = vmatprep.subr.bf16.mxu0 0
        %407 = vmatpush1.bf16.msra.mxu0 0
        %408 = vmatprep.subr.bf16.mxu0 0
        %409 = vmatpush1.bf16.msra.mxu0 0
        %410 = vmatprep.subr.bf16.mxu0 0
        %411 = vmatpush1.bf16.msra.mxu0 0
        %412 = vmatprep.subr.bf16.mxu0 0
        %413 = vmatpush1.bf16.msra.mxu0 0
        %414 = vmatprep.subr.bf16.mxu0 0
        %415 = vmatpush1.bf16.msra.mxu0 0
        %416 = vmatprep.subr.bf16.mxu0 0
        %417 = vmatpush1.bf16.msra.mxu0 0
        %418 = vmatprep.subr.bf16.mxu0 0
        %419 = vmatpush1.bf16.msra.mxu0 0
        %420 = vmatprep.subr.bf16.mxu0 0
        %421 = vmatpush1.bf16.msra.mxu0 0
        %422 = vmatprep.mubr.bf16.mxu0 0
        %423 = vmatmul.mubr.bf16.gmra.mrb[0].mxu0 %v385
        %v424 = vpop.f32.mrb[0].mxu0
        %v425 = vadd.f32 0.0, %v424
        %v426 = vpop.f32.mrb[0].mxu0
        %v427 = vpop.f32.mrb[0].mxu0
        %v428 = vpop.f32.mrb[0].mxu0
        %429 = vdwg.mxu0
        %v430 = vadd.f32 %v371, %v425
        %v431 = vld [vmem:[%s3] sm:$0xff]
        %433 = vset.pattern.permute.xlu0 0
        %434 = vperm.xlu0 %433, %v431
        %v435 = vpop.permute.xlu0 %434
        %v437 = vadd.f32 %v430, %v435
        %438 = vst [vmem:[%s256] sm:$0xff] %v437
        %s439 = sand.u32 %s143, 1
        %s440 = scalar_lea.sflag [#allocation4], %s439
        %s441 = sand.u32 %s143, 1
        %s442 = smul.addr %s441, 8
        %s443 = scalar_lea.vmem [#allocation5], %s442
        // Predicated region
        $region41: #{tpu_custom_call.1} parent=35 // pred_check
          %p444 = pneg %p153
        $region42: #{tpu_custom_call.1} parent=35 // pred_check_branch
          %446 = sbr.rel (%p444) target = $region44
        $region43: #{tpu_custom_call.1} parent=35 // pred_region
          %s448 = ssub.s32 128, 128
          %449 = vsyncadd %s440, %s448
          %s450 = sadd.s32 %s26, %s25
          %s451 = smul.addr %s450, 128
          %s452 = scalar_lea.hbm %s4, %s451
          %s454 = sshll.u32 %s443, 4
          %s455 = int_to_ptr.vmem [resolvable:$true] %s454
          %457 = dma.vmem_to_hbm [thread:$0]  %s455, 128, %s452, %s440
        $region44: #{tpu_custom_call.1} parent=35 // pred_fallthru
          _
      $region36: #{tpu_custom_call.1} parent=5 // pred_fallthru
        _
      %p458 = scmp.le.s32.totalorder 2, %s16
      // Predicated region
      $region45: #{tpu_custom_call.1} parent=5 // pred_check
        %p459 = pneg %p458
      $region46: #{tpu_custom_call.1} parent=5 // pred_check_branch
        %461 = sbr.rel (%p459) target = $region48
      $region47: #{tpu_custom_call.1} parent=5 // pred_region
        %s462 = ssub.s32 %s16, 2
        // Predicated region
        $region49: #{tpu_custom_call.1} parent=47 // pred_check
          %p463 = pneg %p159
        $region50: #{tpu_custom_call.1} parent=47 // pred_check_branch
          %465 = sbr.rel (%p463) target = $region52
        $region51: #{tpu_custom_call.1} parent=47 // pred_region
          %s466 = sand.u32 %s144, 1
          %s467 = scalar_lea.sflag [#allocation4], %s466
          %s468 = sand.u32 %s144, 1
          %s469 = smul.addr %s468, 8
          %s470 = scalar_lea.vmem [#allocation5], %s469
          %471 = dma.done %s467, 128
        $region52: #{tpu_custom_call.1} parent=47 // pred_fallthru
          _
      $region48: #{tpu_custom_call.1} parent=5 // pred_fallthru
        _
    $region6: #{tpu_custom_call.1} parent=1 // loop_footer
      %s20 = sadd.s32 1, %s16
    $region7: #{tpu_custom_call.1} parent=1 // loop_footer_branch
      %15 = sbr.rel target = $region3
    $region8: #{tpu_custom_call.1} parent=1 // loop_exit
      _
    %472 = vsyncpa [#allocation3], 1
    %s473 = scalar_lea.sflag [#allocation3], 1
    %474 = vsyncpa %s473, 1
    %475 = vsyncpa [#allocation4], 1
    %s476 = scalar_lea.sflag [#allocation4], 1
    %477 = vsyncpa %s476, 1

</llo_original>
